<compile_context>
chip_gen: v5e
topology: v5e:2x2
jax: 0.10.0
libtpu: 0.0.40
codegen_flags: <defaults>
</compile_context>

<pallas_src>
import math

import jax
import jax.numpy as jnp
from jax import lax
from jax.experimental import pallas as pl
from jax.experimental.pallas import tpu as pltpu

_INV_SQRT2 = 0.7071067811865476
_SQRT_2_OVER_PI = math.sqrt(2.0 / math.pi)


def _make_kernel(exact_gelu: bool):
    def kernel(x_ref, w_ref, b_ref, o_ref):
        """One (tm, tn) output tile: y = x @ w.T + b ; o = gelu(y).

        x_ref: (tm, H)   activations, full hidden dim (no K tiling)
        w_ref: (tn, H)   weight rows in PyTorch [out, in] layout
        b_ref: (1, tn)   bias slice for this output-column tile
        o_ref: (tm, tn)
        """
        y = lax.dot_general(
            x_ref[...],
            w_ref[...],
            dimension_numbers=(((1,), (1,)), ((), ())),  # contract on H (x @ w.T)
            preferred_element_type=jnp.float32,
        )
        y = y + b_ref[...].astype(jnp.float32)
        if exact_gelu:
            # HF BERT 'gelu': 0.5 * x * (1 + erf(x / sqrt(2))), f32 epilogue.
            g = 0.5 * y * (1.0 + lax.erf(y * _INV_SQRT2))
        else:
            # tanh approximation ('gelu_new'); tanh goes to the EUP slot.
            g = 0.5 * y * (1.0 + jnp.tanh(_SQRT_2_OVER_PI * (y + 0.044715 * (y * y * y))))
        o_ref[...] = g.astype(o_ref.dtype)

    return kernel


def _clamp_tile(requested: int, dim: int, mult: int) -> int:
    """Clamp a tile to the dim; round down to `mult` unless it covers the dim."""
    if requested >= dim:
        return dim
    return max(mult, (requested // mult) * mult)


def bert_intermediate(hidden_states, weight, bias, *,
                      tm=512, tn=None,
                      compute_dtype=jnp.bfloat16,
                      out_dtype=None,
                      activation="gelu",
                      vmem_limit_bytes=None):
    """hidden_states: [B, S, H]; weight: [I, H] (nn.Linear layout); bias: [I].

    Returns act(hidden_states @ weight.T + bias) with shape [B, S, I].

    tm / tn: output tile sizes.  tn=None means tn = I (grid_n = 1), so every
      tensor crosses HBM exactly once.
    compute_dtype: dtype of the matmul operands (default bf16 — the fast path
      on every generation).  Pass jnp.float32 for full-precision operands.
    out_dtype: output element type (default: hidden_states.dtype).  bf16 halves
      writeback bytes of the largest tensor in the HBM-bound regime.
    activation: "gelu" (exact erf, HF 'gelu') or "gelu_tanh" (tanh approx).
    vmem_limit_bytes: override the auto-computed scoped-VMEM limit.
    """
    if activation not in ("gelu", "gelu_tanh"):
        raise ValueError(f"unsupported activation: {activation}")

    B, S, H = hidden_states.shape
    I = weight.shape[0]
    assert weight.shape == (I, H)
    M = B * S

    out_dtype = hidden_states.dtype if out_dtype is None else out_dtype

    x2d = hidden_states.reshape(M, H)
    w = weight
    if compute_dtype is not None:
        x2d = x2d.astype(compute_dtype)
        w = w.astype(compute_dtype)
    b2d = bias.reshape(1, I)

    # Tile clamping + (8, 128) rounding so caller-supplied tiles stay legal.
    tm_eff = _clamp_tile(tm, M, 8)
    tn_eff = _clamp_tile(I if tn is None else tn, I, 128)
    grid_m = pl.cdiv(M, tm_eff)
    grid_n = pl.cdiv(I, tn_eff)

    # Scoped-VMEM limit from the actual (double-buffered) tile footprint.
    if vmem_limit_bytes is None:
        x_b = jnp.dtype(x2d.dtype).itemsize
        w_b = jnp.dtype(w.dtype).itemsize
        bias_b = jnp.dtype(b2d.dtype).itemsize
        o_b = jnp.dtype(out_dtype).itemsize
        est = 2 * (tm_eff * H * x_b          # x tile
                   + tn_eff * H * w_b        # weight tile
                   + tn_eff * bias_b         # bias tile
                   + tm_eff * tn_eff * o_b)  # output tile
        vmem_limit_bytes = int(min(max(est * 5 // 4 + (8 << 20), 32 << 20), 100 << 20))

    kernel = _make_kernel(exact_gelu=(activation == "gelu"))

    out2d = pl.pallas_call(
        kernel,
        out_shape=jax.ShapeDtypeStruct((M, I), out_dtype),
        grid_spec=pltpu.PrefetchScalarGridSpec(
            num_scalar_prefetch=0,
            # n outermost: weight/bias blocks are resident across the inner m loop.
            grid=(grid_n, grid_m),
            in_specs=[
                pl.BlockSpec((tm_eff, H), lambda j, i: (i, 0)),   # x tile, full K
                pl.BlockSpec((tn_eff, H), lambda j, i: (j, 0)),   # weight tile, [out, in]
                pl.BlockSpec((1, tn_eff), lambda j, i: (0, j)),   # bias tile
            ],
            out_specs=pl.BlockSpec((tm_eff, tn_eff), lambda j, i: (i, j)),
        ),
        compiler_params=pltpu.CompilerParams(
            dimension_semantics=("parallel", "parallel"),
            vmem_limit_bytes=vmem_limit_bytes,
        ),
    )(x2d, w, b2d)

    return out2d.reshape(B, S, I)


def reference(hidden_states, weight, bias):
    y = jnp.einsum("bsh,ih->bsi", hidden_states, weight) + bias
    return 0.5 * y * (1.0 + lax.erf(y * _INV_SQRT2))


if __name__ == "__main__":
    # Small config: batch=2, seq=8, hidden_size=32, intermediate_size=128.
    B, S, H, I = 2, 8, 32, 128

    key = jax.random.PRNGKey(0)
    kx, kw, kb = jax.random.split(key, 3)

    hidden_states = jax.random.normal(kx, (B, S, H), dtype=jnp.float32)
    # Deterministic synthetic parameters (PyTorch nn.Linear layout: [out, in]).
    weight = jax.random.normal(kw, (I, H), dtype=jnp.float32) * 0.02
    bias = jax.random.normal(kb, (I,), dtype=jnp.float32) * 0.02

    ref = reference(hidden_states, weight, bias)

    # Default fast path: bf16 operands, f32 accumulation + GELU, f32 output.
    out = jax.block_until_ready(bert_intermediate(hidden_states, weight, bias))
    assert out.shape == (B, S, I)
    assert out.dtype == hidden_states.dtype
    assert jnp.allclose(out, ref, atol=2e-2, rtol=2e-2)

    # Full-precision operand path (tight tolerance vs the f32 reference).
    out_f32 = jax.block_until_ready(
        bert_intermediate(hidden_states, weight, bias, compute_dtype=jnp.float32)
    )
    assert jnp.allclose(out_f32, ref, atol=1e-5, rtol=1e-5)

    # bf16 output path (halves writeback bytes for the largest tensor).
    out_bf16 = jax.block_until_ready(
        bert_intermediate(hidden_states, weight, bias, out_dtype=jnp.bfloat16)
    )
    assert out_bf16.dtype == jnp.bfloat16
    assert jnp.allclose(out_bf16.astype(jnp.float32), ref, atol=3e-2, rtol=3e-2)

    # tanh-approx GELU path (EUP epilogue; looser tolerance vs exact-erf ref).
    out_tanh = jax.block_until_ready(
        bert_intermediate(hidden_states, weight, bias, activation="gelu_tanh")
    )
    assert jnp.allclose(out_tanh, ref, atol=3e-2, rtol=3e-2)

    print("KERNEL_OK")
</pallas_src>

<mosaic_0001>
module attributes {stable_mosaic.version = 11 : i64} {
  func.func @kernel(%arg0: i32, %arg1: i32, %arg2: memref<16x32xbf16, #tpu.memory_space<vmem>>, %arg3: memref<128x32xbf16, #tpu.memory_space<vmem>>, %arg4: memref<1x128xf32, #tpu.memory_space<vmem>>, %arg5: memref<16x128xf32, #tpu.memory_space<vmem>>) attributes {dimension_semantics = [#tpu.dimension_semantics<parallel>, #tpu.dimension_semantics<parallel>], iteration_bounds = array<i64: 1, 1>, scalar_prefetch = 0 : i64, scratch_operands = 0 : i64, tpu.core_type = #tpu.core_type<tc>, window_params = [{transform_indices = @transform_0, window_bounds = array<i64: 16, 32>}, {transform_indices = @transform_1, window_bounds = array<i64: 128, 32>}, {transform_indices = @transform_2, window_bounds = array<i64: 1, 128>}, {transform_indices = @transform_3, window_bounds = array<i64: 16, 128>}]} {
    %c0 = arith.constant 0 : index
    %c0_0 = arith.constant 0 : index
    %0 = vector.load %arg2[%c0, %c0_0] : memref<16x32xbf16, #tpu.memory_space<vmem>>, vector<16x32xbf16>
    %c0_1 = arith.constant 0 : index
    %c0_2 = arith.constant 0 : index
    %1 = vector.load %arg3[%c0_1, %c0_2] : memref<128x32xbf16, #tpu.memory_space<vmem>>, vector<128x32xbf16>
    %cst = arith.constant dense<0.000000e+00> : vector<16x128xf32>
    %2 = tpu.matmul %0, %1, %cst {dimension_numbers = #tpu.dot_dimension_numbers<[1], [1], [0], [0], [0, 0, 1, 0], [], []>} : vector<16x32xbf16>, vector<128x32xbf16>, vector<16x128xf32> -> vector<16x128xf32>
    %c0_3 = arith.constant 0 : index
    %c0_4 = arith.constant 0 : index
    %3 = vector.load %arg4[%c0_3, %c0_4] : memref<1x128xf32, #tpu.memory_space<vmem>>, vector<1x128xf32>
    %4 = vector.broadcast %3 : vector<1x128xf32> to vector<16x128xf32>
    %5 = arith.addf %2, %4 : vector<16x128xf32>
    %cst_5 = arith.constant 5.000000e-01 : f32
    %6 = vector.broadcast %cst_5 : f32 to vector<16x128xf32>
    %7 = arith.mulf %6, %5 : vector<16x128xf32>
    %cst_6 = arith.constant 0.707106769 : f32
    %8 = vector.broadcast %cst_6 : f32 to vector<16x128xf32>
    %9 = arith.mulf %5, %8 : vector<16x128xf32>
    %10 = math.erf %9 : vector<16x128xf32>
    %cst_7 = arith.constant 1.000000e+00 : f32
    %11 = vector.broadcast %cst_7 : f32 to vector<16x128xf32>
    %12 = arith.addf %11, %10 : vector<16x128xf32>
    %13 = arith.mulf %7, %12 : vector<16x128xf32>
    %c0_8 = arith.constant 0 : index
    %c0_9 = arith.constant 0 : index
    %14 = vector.load %arg5[%c0_8, %c0_9] : memref<16x128xf32, #tpu.memory_space<vmem>>, vector<16x128xf32>
    tpu.vector_store %arg5[%c0_8, %c0_9], %13 {strides = array<i32>} : memref<16x128xf32, #tpu.memory_space<vmem>>, vector<16x128xf32>,
    return
  }
  func.func @transform_0(%arg0: i32, %arg1: i32) -> (i32, i32) {
    %c0_i32 = arith.constant 0 : i32
    %c0_i32_0 = arith.constant 0 : i32
    return %arg1, %c0_i32 : i32, i32
  }
  func.func @transform_1(%arg0: i32, %arg1: i32) -> (i32, i32) {
    %c0_i32 = arith.constant 0 : i32
    %c0_i32_0 = arith.constant 0 : i32
    return %arg0, %c0_i32 : i32, i32
  }
  func.func @transform_2(%arg0: i32, %arg1: i32) -> (i32, i32) {
    %c0_i32 = arith.constant 0 : i32
    %c0_i32_0 = arith.constant 0 : i32
    return %c0_i32, %arg0 : i32, i32
  }
  func.func @transform_3(%arg0: i32, %arg1: i32) -> (i32, i32) {
    %c0_i32 = arith.constant 0 : i32
    return %arg1, %arg0 : i32, i32
  }
}

</mosaic_0001>

<llo_original>
// kernel: tpu_custom_call.1
$region0: #{tpu_custom_call.1}
  #allocation0 [shape = 'u32[]', space=smem, size = 0x4, offset = 0x4, fixed_abs, tag = 'smem constant byte address 0x4 - core index']
  #allocation1 [shape = 'u32[72,128]{1,0:T(1,128)}', space=vmem, size = 0x9000, scoped, tag = 'internal scratch']
  %s0 = inlined_call_operand.vmem [shape: bf16[16,32], index: 0, kind: input, shape index: {}]
  %s1 = inlined_call_operand.vmem [shape: bf16[128,32], index: 1, kind: input, shape index: {}]
  %s2 = inlined_call_operand.vmem [shape: f32[1,128], index: 2, kind: input, shape index: {}]
  %s3 = inlined_call_operand.hbm [shape: f32[16,128], index: 3, kind: output, shape index: {}]
  %s4 = sld [smem:[#allocation0]]
  $region22: #{tpu_custom_call.1} parent=0
    _
  %s6 = ssub.s32 1, %s4
  %s7 = scalar_select 0, %s6, %s4
  $region1: #{tpu_custom_call.1} parent=0
    #allocation2 [shape = 'u8[8192]{0}', space=vmem, size = 0x2000, scoped, tag = 'output window, operand 0, single buffered']
    #allocation3 [shape = 's32[1]{0}', space=sflag, size = 0x4, scoped, tag = 'scoped memory for tpu_custom_call.1']
    %8 = vsyncpa [#allocation3], 0
    // Predicated region
    $region2: #{tpu_custom_call.1} parent=1 // pred_check
      _
    $region3: #{tpu_custom_call.1} parent=1 // pred_check_branch
      %10 = sbr.rel (0) target = $region5
    $region4: #{tpu_custom_call.1} parent=1 // pred_region
      _
    $region5: #{tpu_custom_call.1} parent=1 // pred_fallthru
      _
    // Predicated region
    $region6: #{tpu_custom_call.1} parent=1 // pred_check
      _
    $region7: #{tpu_custom_call.1} parent=1 // pred_check_branch
      %12 = sbr.rel (0) target = $region9
    $region8: #{tpu_custom_call.1} parent=1 // pred_region
      _
    $region9: #{tpu_custom_call.1} parent=1 // pred_fallthru
      _
    // Predicated region
    $region10: #{tpu_custom_call.1} parent=1 // pred_check
      _
    $region11: #{tpu_custom_call.1} parent=1 // pred_check_branch
      %14 = sbr.rel (0) target = $region13
    $region12: #{tpu_custom_call.1} parent=1 // pred_region
      _
    $region13: #{tpu_custom_call.1} parent=1 // pred_fallthru
      _
    %v15 = vld [vmem:[%s0] sm:$0xf]
    %v16 = vld [vmem:[%s0 + $0x4] sm:$0xf]
    %v17 = vld [vmem:[%s1] sm:$0xf]
    %v18 = vld [vmem:[%s1 + $0x4] sm:$0xf]
    %v19 = vld [vmem:[%s1 + $0x8] sm:$0xf]
    %v20 = vld [vmem:[%s1 + $0xc] sm:$0xf]
    %v21 = vld [vmem:[%s1 + $0x10] sm:$0xf]
    %v22 = vld [vmem:[%s1 + $0x14] sm:$0xf]
    %v23 = vld [vmem:[%s1 + $0x18] sm:$0xf]
    %v24 = vld [vmem:[%s1 + $0x1c] sm:$0xf]
    %v25 = vld [vmem:[%s1 + $0x20] sm:$0xf]
    %v26 = vld [vmem:[%s1 + $0x24] sm:$0xf]
    %v27 = vld [vmem:[%s1 + $0x28] sm:$0xf]
    %v28 = vld [vmem:[%s1 + $0x2c] sm:$0xf]
    %v29 = vld [vmem:[%s1 + $0x30] sm:$0xf]
    %v30 = vld [vmem:[%s1 + $0x34] sm:$0xf]
    %v31 = vld [vmem:[%s1 + $0x38] sm:$0xf]
    %v32 = vld [vmem:[%s1 + $0x3c] sm:$0xf]
    %v33 = vld [vmem:[%s2] sm:$0x1]
    %v35 = vperm.slane %v33, 0
    %v39 = vunpack.c.l.b16 %v15
    %v40 = vunpack.c.l.b16 %v16
    %v41 = vpack.c.b16 %v40, %v39
    %v58 = vunpack.c.l.b16 %v17
    %v59 = vunpack.c.l.b16 %v18
    %v60 = vunpack.c.l.b16 %v19
    %v61 = vunpack.c.l.b16 %v20
    %v62 = vunpack.c.l.b16 %v21
    %v63 = vunpack.c.l.b16 %v22
    %v64 = vunpack.c.l.b16 %v23
    %v65 = vunpack.c.l.b16 %v24
    %v66 = vunpack.c.l.b16 %v25
    %v67 = vunpack.c.l.b16 %v26
    %v68 = vunpack.c.l.b16 %v27
    %v69 = vunpack.c.l.b16 %v28
    %v70 = vunpack.c.l.b16 %v29
    %v71 = vunpack.c.l.b16 %v30
    %v72 = vunpack.c.l.b16 %v31
    %v73 = vunpack.c.l.b16 %v32
    %v74 = vpack.c.b16 %v59, %v58
    %v75 = vpack.c.b16 %v61, %v60
    %v76 = vpack.c.b16 %v63, %v62
    %v77 = vpack.c.b16 %v65, %v64
    %v78 = vpack.c.b16 %v67, %v66
    %v79 = vpack.c.b16 %v69, %v68
    %v80 = vpack.c.b16 %v71, %v70
    %v81 = vpack.c.b16 %v73, %v72
    %vm82 = vcmask 261120
    %v84 = vsel %vm82, %v41, 0
    %v87 = vsel %vm82, %v74, 0
    %v90 = vsel %vm82, %v75, 0
    %v93 = vsel %vm82, %v76, 0
    %v96 = vsel %vm82, %v77, 0
    %v99 = vsel %vm82, %v78, 0
    %v102 = vsel %vm82, %v79, 0
    %v105 = vsel %vm82, %v80, 0
    %v108 = vsel %vm82, %v81, 0
    %110 = vmatpush.bf16.xpose.msra.mxu0 %v108
    %111 = vmatpush.bf16.xpose.msra.mxu0 %v105
    %112 = vmatpush.bf16.xpose.msra.mxu0 %v102
    %113 = vmatpush.bf16.xpose.msra.mxu0 %v99
    %114 = vmatpush.bf16.xpose.msra.mxu0 %v96
    %115 = vmatpush.bf16.xpose.msra.mxu0 %v93
    %116 = vmatpush.bf16.xpose.msra.mxu0 %v90
    %117 = vmatpush.bf16.xpose.msra.mxu0 %v87
    %118 = vmatmul.bf16.gmra.mxu0 %v84
    %v119 = vpop.f32.mrf.mxu0
    %v120 = vadd.f32 %v35, %v119
    %v121 = vpop.f32.mrf.mxu0
    %v122 = vadd.f32 %v35, %v121
    %123 = vdwg.mxu0
    %v124 = vmul.f32 %v120, 0.5
    %v125 = vmul.f32 %v122, 0.5
    %v126 = vmul.f32 %v120, 0.70710677
    %v127 = vmul.f32 %v122, 0.70710677
    %v128 = vmul.f32 %v126, %v126
    %v129 = vmin.f32 16.0, %v128
    %v130 = vmul.f32 %v129, 2.1237322e-06
    %v131 = vadd.f32 %v130, 0.00028619796
    %v132 = vmul.f32 %v129, %v131
    %v133 = vadd.f32 %v132, 0.0036580483
    %v134 = vmul.f32 %v129, %v133
    %v135 = vadd.f32 %v134, 0.05243302
    %v136 = vmul.f32 %v129, %v135
    %v137 = vadd.f32 %v136, 0.18741608
    %v138 = vmul.f32 %v129, %v137
    %v139 = vadd.f32 %v138, 1.1283791
    %v140 = vmul.f32 %v126, %v139
    %v141 = vmul.f32 %v129, 3.8918573e-05
    %v142 = vadd.f32 %v141, 0.001143296
    %v143 = vmul.f32 %v129, %v142
    %v144 = vadd.f32 %v143, 0.014752088
    %v145 = vmul.f32 %v129, %v144
    %v146 = vadd.f32 %v145, 0.112945676
    %v147 = vmul.f32 %v129, %v146
    %v148 = vadd.f32 %v147, 0.4994258
    %v149 = vmul.f32 %v129, %v148
    %v150 = vadd.f32 %v149, 1.0
    %v151 = vrcp.pop %v150
    %v152 = vmul.f32 %v150, %v151
    %v153 = vsub.f32 1.0, %v152
    %v154 = vmul.f32 %v151, %v153
    %v155 = vadd.f32 %v151, %v154
    %vm156 = vweird.f32 %v150
    %vm157 = vweird.f32 %v151
    %vm158 = vmor %vm156, %vm157
    %v159 = vsel %vm158, %v151, %v155
    %v160 = vand.u32 2147483647, %v150
    %vm161 = vcmp.eq.f32.partialorder %v160, 8.507059e+37
    %v162 = vand.u32 %v150, 2147483648
    %v163 = vor.u32 1.1754944e-38, %v162
    %v164 = vsel %vm161, %v163, %v159
    %v165 = vmul.f32 %v140, %v164
    %v166 = vmin.f32 %v165, 1.0
    %v167 = vmax.f32 %v166, -1.0
    %v168 = vmul.f32 %v127, %v127
    %v169 = vmin.f32 16.0, %v168
    %v170 = vmul.f32 %v169, 2.1237322e-06
    %v171 = vadd.f32 %v170, 0.00028619796
    %v172 = vmul.f32 %v169, %v171
    %v173 = vadd.f32 %v172, 0.0036580483
    %v174 = vmul.f32 %v169, %v173
    %v175 = vadd.f32 %v174, 0.05243302
    %v176 = vmul.f32 %v169, %v175
    %v177 = vadd.f32 %v176, 0.18741608
    %v178 = vmul.f32 %v169, %v177
    %v179 = vadd.f32 %v178, 1.1283791
    %v180 = vmul.f32 %v127, %v179
    %v181 = vmul.f32 %v169, 3.8918573e-05
    %v182 = vadd.f32 %v181, 0.001143296
    %v183 = vmul.f32 %v169, %v182
    %v184 = vadd.f32 %v183, 0.014752088
    %v185 = vmul.f32 %v169, %v184
    %v186 = vadd.f32 %v185, 0.112945676
    %v187 = vmul.f32 %v169, %v186
    %v188 = vadd.f32 %v187, 0.4994258
    %v189 = vmul.f32 %v169, %v188
    %v190 = vadd.f32 %v189, 1.0
    %v191 = vrcp.pop %v190
    %v192 = vmul.f32 %v190, %v191
    %v193 = vsub.f32 1.0, %v192
    %v194 = vmul.f32 %v191, %v193
    %v195 = vadd.f32 %v191, %v194
    %vm196 = vweird.f32 %v190
    %vm197 = vweird.f32 %v191
    %vm198 = vmor %vm196, %vm197
    %v199 = vsel %vm198, %v191, %v195
    %v200 = vand.u32 2147483647, %v190
    %vm201 = vcmp.eq.f32.partialorder %v200, 8.507059e+37
    %v202 = vand.u32 %v190, 2147483648
    %v203 = vor.u32 1.1754944e-38, %v202
    %v204 = vsel %vm201, %v203, %v199
    %v205 = vmul.f32 %v180, %v204
    %v206 = vmin.f32 %v205, 1.0
    %v207 = vmax.f32 %v206, -1.0
    %v208 = vadd.f32 %v167, 1.0
    %v209 = vadd.f32 %v207, 1.0
    %v210 = vmul.f32 %v124, %v208
    %v211 = vmul.f32 %v125, %v209
    %212 = vst [vmem:[#allocation2] sm:$0xff] %v210
    %213 = vst [vmem:[#allocation2 + $0x8] sm:$0xff] %v211
    // Predicated region
    $region14: #{tpu_custom_call.1} parent=1 // pred_check
      _
    $region15: #{tpu_custom_call.1} parent=1 // pred_check_branch
      %215 = sbr.rel (0) target = $region17
    $region16: #{tpu_custom_call.1} parent=1 // pred_region
      %217 = vsyncadd [#allocation3], 0
      %s218 = sshll.u32 [#allocation2], 4
      %s219 = int_to_ptr.vmem [resolvable:$true] %s218
      %s220 = sshll.u32 %s3, 4
      %s221 = int_to_ptr.hbm [resolvable:$true] %s220
      %226 = dma.vmem_to_hbm [thread:$0]  %s219, 256, %s221, [#allocation3], 128, 128, 8
    $region17: #{tpu_custom_call.1} parent=1 // pred_fallthru
      _
    // Predicated region
    $region18: #{tpu_custom_call.1} parent=1 // pred_check
      _
    $region19: #{tpu_custom_call.1} parent=1 // pred_check_branch
      %228 = sbr.rel (0) target = $region21
    $region20: #{tpu_custom_call.1} parent=1 // pred_region
      %230 = dma.done [#allocation3], 256
    $region21: #{tpu_custom_call.1} parent=1 // pred_fallthru
      _
    %231 = vsyncpa [#allocation3], 1

</llo_original>
